<compile_context>
chip_gen: v6e
topology: v6e:2x2x1
jax: 0.10.0
libtpu: 0.0.40
codegen_flags: <defaults>
</compile_context>

<pallas_src>
import functools

import jax
import jax.numpy as jnp
from jax.experimental import pallas as pl
from jax.experimental.pallas import tpu as pltpu

HIDDEN = 50          # logical hidden size of the PyTorch module
HIDDEN_PAD = 64      # padded once at pack time (sublane friendly)


def _round_up(x, m):
    return ((x + m - 1) // m) * m


def mlp_kernel(x_ref, w1_ref, b1_ref, w2_ref, b2_ref, o_ref):
    # in-kernel cast: x streams from HBM in its native dtype (f32)
    xb = x_ref[...].astype(jnp.bfloat16)
    # fc1: (TM, D_in)bf16 @ (D_in, 64)bf16 -> f32 acc (MXU)
    h = jnp.dot(xb, w1_ref[...], preferred_element_type=jnp.float32)
    # bias + ReLU in f32 on the small (TM, 64) intermediate (VPU)
    h = jnp.maximum(h + b1_ref[...], 0.0)
    # fc2: (TM, 64)bf16 @ (64, C)bf16 -> f32 acc (MXU)
    y = jnp.dot(h.astype(w2_ref.dtype), w2_ref[...],
                preferred_element_type=jnp.float32)
    o_ref[...] = (y + b2_ref[...]).astype(o_ref.dtype)


@functools.partial(jax.jit, static_argnames=("tm",))
def nn_forward(x, w1p, b1p, w2p, b2p, *, tm=2048):
    """relu(x @ W1 + b1) @ W2 + b2 with packed params.

    x   : (B, D_in) float (cast to bf16 inside the kernel)
    w1p : (D_in, HIDDEN_PAD) bf16, zero-padded past column HIDDEN
    b1p : (1, HIDDEN_PAD)    f32,  zero-padded
    w2p : (HIDDEN_PAD, C)    bf16, zero-padded rows past HIDDEN
    b2p : (1, C)             f32
    Returns (B, C) f32 (C == num_classes, no padding, no extra slice pass).
    """
    B, D_in = x.shape
    H = w1p.shape[1]
    C = w2p.shape[1]

    # --- batch tile: big (amortize per-step overhead), multiple of 8,
    #     but capped so the grid has >= 2 steps when possible (v7x megacore).
    tm_eff = min(_round_up(tm, 8), _round_up(B, 8))
    half = _round_up(pl.cdiv(B, 2), 8)
    tm_eff = max(8, min(tm_eff, half))
    grid = (pl.cdiv(B, tm_eff),)   # ragged tail handled by Pallas masking

    flops = 2 * B * (D_in * H + H * C)
    bytes_accessed = (B * D_in * 4            # x (f32, read once)
                      + B * C * 4             # out (f32, exact width)
                      + (D_in * H + H * C) * 2  # weights (bf16, resident)
                      + (H + C) * 4)          # biases (f32)

    out = pl.pallas_call(
        mlp_kernel,
        out_shape=jax.ShapeDtypeStruct((B, C), jnp.float32),
        grid_spec=pltpu.PrefetchScalarGridSpec(
            num_scalar_prefetch=0,
            grid=grid,
            in_specs=[
                # x tile streams over the batch grid axis (double-buffered)
                pl.BlockSpec((tm_eff, D_in), lambda i: (i, 0)),
                # weights / biases stay VMEM-resident across iterations
                pl.BlockSpec((D_in, H), lambda i: (0, 0)),
                pl.BlockSpec((1, H), lambda i: (0, 0)),
                pl.BlockSpec((H, C), lambda i: (0, 0)),
                pl.BlockSpec((1, C), lambda i: (0, 0)),
            ],
            out_specs=pl.BlockSpec((tm_eff, C), lambda i: (i, 0)),
        ),
        compiler_params=pltpu.CompilerParams(
            dimension_semantics=("parallel",),   # megacore sharding on v7x
        ),
        cost_estimate=pl.CostEstimate(
            flops=flops, transcendentals=0, bytes_accessed=bytes_accessed),
    )(x, w1p, b1p, w2p, b2p)

    return out


def init_params(key, input_size, num_classes, hidden=HIDDEN):
    """PyTorch nn.Linear-style init: U(-1/sqrt(fan_in), 1/sqrt(fan_in)).

    Weights stored pre-transposed as (in_features, out_features).
    """
    k1, k2, k3, k4 = jax.random.split(key, 4)
    bound1 = 1.0 / jnp.sqrt(input_size)
    bound2 = 1.0 / jnp.sqrt(hidden)
    w1 = jax.random.uniform(k1, (input_size, hidden), jnp.float32, -bound1, bound1)
    b1 = jax.random.uniform(k2, (hidden,), jnp.float32, -bound1, bound1)
    w2 = jax.random.uniform(k3, (hidden, num_classes), jnp.float32, -bound2, bound2)
    b2 = jax.random.uniform(k4, (num_classes,), jnp.float32, -bound2, bound2)
    return w1, b1, w2, b2


def pack_params(w1, b1, w2, b2):
    """Zero-pad hidden dim to 64 and cast weights to bf16 (done once).

    The class dim is left at its logical width (no output padding)."""
    d_in, h = w1.shape
    c = w2.shape[1]
    w1p = jnp.zeros((d_in, HIDDEN_PAD), jnp.float32).at[:, :h].set(w1)
    b1p = jnp.zeros((1, HIDDEN_PAD), jnp.float32).at[0, :h].set(b1)
    w2p = jnp.zeros((HIDDEN_PAD, c), jnp.float32).at[:h, :].set(w2)
    b2p = b2.reshape(1, c).astype(jnp.float32)
    return (w1p.astype(jnp.bfloat16), b1p,
            w2p.astype(jnp.bfloat16), b2p)


def _reference(x, w1p, b1p, w2p, b2p):
    """Plain-JAX reference mirroring the kernel's bf16-operand / f32-acc math."""
    xb = x.astype(jnp.bfloat16).astype(jnp.float32)
    h = jnp.maximum(xb @ w1p.astype(jnp.float32) + b1p, 0.0)
    hb = h.astype(jnp.bfloat16).astype(jnp.float32)
    return hb @ w2p.astype(jnp.float32) + b2p


if __name__ == "__main__":
    key = jax.random.PRNGKey(0)
    kx, kx2, kp = jax.random.split(key, 3)

    batch = 8
    input_size = 32
    num_classes = 10

    w1, b1, w2, b2 = init_params(kp, input_size, num_classes)
    w1p, b1p, w2p, b2p = pack_params(w1, b1, w2, b2)

    # --- main check: single-tile batch -----------------------------------
    x = jax.random.normal(kx, (batch, input_size), dtype=jnp.float32)
    out = nn_forward(x, w1p, b1p, w2p, b2p)
    out = jax.block_until_ready(out)
    ref = _reference(x, w1p, b1p, w2p, b2p)
    assert out.shape == (batch, num_classes)
    assert jnp.allclose(out, ref, atol=1e-2, rtol=1e-2), (
        float(jnp.max(jnp.abs(out - ref))))

    # --- second check: multi-step grid with a ragged last block ----------
    batch2 = 20
    x2 = jax.random.normal(kx2, (batch2, input_size), dtype=jnp.float32)
    out2 = nn_forward(x2, w1p, b1p, w2p, b2p, tm=8)   # grid = cdiv(20, 8) = 3
    out2 = jax.block_until_ready(out2)
    ref2 = _reference(x2, w1p, b1p, w2p, b2p)
    assert out2.shape == (batch2, num_classes)
    assert jnp.allclose(out2, ref2, atol=1e-2, rtol=1e-2), (
        float(jnp.max(jnp.abs(out2 - ref2))))

    print("KERNEL_OK")
</pallas_src>

<mosaic_0001>
module attributes {stable_mosaic.version = 11 : i64} {
  func.func @mlp_kernel(%arg0: i32, %arg1: memref<8x32xf32, #tpu.memory_space<vmem>>, %arg2: memref<32x64xbf16, #tpu.memory_space<vmem>>, %arg3: memref<1x64xf32, #tpu.memory_space<vmem>>, %arg4: memref<64x10xbf16, #tpu.memory_space<vmem>>, %arg5: memref<1x10xf32, #tpu.memory_space<vmem>>, %arg6: memref<8x10xf32, #tpu.memory_space<vmem>>) attributes {dimension_semantics = [#tpu.dimension_semantics<parallel>], iteration_bounds = array<i64: 1>, scalar_prefetch = 0 : i64, scratch_operands = 0 : i64, tpu.core_type = #tpu.core_type<tc>, window_params = [{transform_indices = @transform_0, window_bounds = array<i64: 8, 32>}, {pipeline_mode = #tpu.pipeline_mode<synchronous>, transform_indices = @transform_1, window_bounds = array<i64: 32, 64>}, {pipeline_mode = #tpu.pipeline_mode<synchronous>, transform_indices = @transform_2, window_bounds = array<i64: 1, 64>}, {pipeline_mode = #tpu.pipeline_mode<synchronous>, transform_indices = @transform_3, window_bounds = array<i64: 64, 10>}, {pipeline_mode = #tpu.pipeline_mode<synchronous>, transform_indices = @transform_4, window_bounds = array<i64: 1, 10>}, {transform_indices = @transform_5, window_bounds = array<i64: 8, 10>}]} {
    %c0 = arith.constant 0 : index
    %c0_0 = arith.constant 0 : index
    %0 = vector.load %arg1[%c0, %c0_0] : memref<8x32xf32, #tpu.memory_space<vmem>>, vector<8x32xf32>
    %1 = arith.truncf %0 : vector<8x32xf32> to vector<8x32xbf16>
    %c0_1 = arith.constant 0 : index
    %c0_2 = arith.constant 0 : index
    %2 = vector.load %arg2[%c0_1, %c0_2] : memref<32x64xbf16, #tpu.memory_space<vmem>>, vector<32x64xbf16>
    %cst = arith.constant dense<0.000000e+00> : vector<8x64xf32>
    %3 = tpu.matmul %1, %2, %cst {dimension_numbers = #tpu.dot_dimension_numbers<[1], [0], [0], [1], [0, 0, 1, 1], [], []>} : vector<8x32xbf16>, vector<32x64xbf16>, vector<8x64xf32> -> vector<8x64xf32>
    %c0_3 = arith.constant 0 : index
    %c0_4 = arith.constant 0 : index
    %4 = vector.load %arg3[%c0_3, %c0_4] : memref<1x64xf32, #tpu.memory_space<vmem>>, vector<1x64xf32>
    %5 = vector.broadcast %4 : vector<1x64xf32> to vector<8x64xf32>
    %6 = arith.addf %3, %5 : vector<8x64xf32>
    %cst_5 = arith.constant 0.000000e+00 : f32
    %7 = vector.broadcast %cst_5 : f32 to vector<8x64xf32>
    %8 = arith.maximumf %6, %7 : vector<8x64xf32>
    %9 = arith.truncf %8 : vector<8x64xf32> to vector<8x64xbf16>
    %c0_6 = arith.constant 0 : index
    %c0_7 = arith.constant 0 : index
    %10 = vector.load %arg4[%c0_6, %c0_7] : memref<64x10xbf16, #tpu.memory_space<vmem>>, vector<64x10xbf16>
    %cst_8 = arith.constant dense<0.000000e+00> : vector<8x10xf32>
    %11 = tpu.matmul %9, %10, %cst_8 {dimension_numbers = #tpu.dot_dimension_numbers<[1], [0], [0], [1], [0, 0, 1, 1], [], []>} : vector<8x64xbf16>, vector<64x10xbf16>, vector<8x10xf32> -> vector<8x10xf32>
    %c0_9 = arith.constant 0 : index
    %c0_10 = arith.constant 0 : index
    %12 = vector.load %arg5[%c0_9, %c0_10] : memref<1x10xf32, #tpu.memory_space<vmem>>, vector<1x10xf32>
    %13 = vector.broadcast %12 : vector<1x10xf32> to vector<8x10xf32>
    %14 = arith.addf %11, %13 : vector<8x10xf32>
    %c0_11 = arith.constant 0 : index
    %c0_12 = arith.constant 0 : index
    %15 = vector.load %arg6[%c0_11, %c0_12] : memref<8x10xf32, #tpu.memory_space<vmem>>, vector<8x10xf32>
    tpu.vector_store %arg6[%c0_11, %c0_12], %14 {strides = array<i32>} : memref<8x10xf32, #tpu.memory_space<vmem>>, vector<8x10xf32>,
    return
  }
  func.func @transform_0(%arg0: i32) -> (i32, i32) {
    %c0_i32 = arith.constant 0 : i32
    %c0_i32_0 = arith.constant 0 : i32
    return %arg0, %c0_i32 : i32, i32
  }
  func.func @transform_1(%arg0: i32) -> (i32, i32) {
    %c0_i32 = arith.constant 0 : i32
    %c0_i32_0 = arith.constant 0 : i32
    %c0_i32_1 = arith.constant 0 : i32
    return %c0_i32, %c0_i32_0 : i32, i32
  }
  func.func @transform_2(%arg0: i32) -> (i32, i32) {
    %c0_i32 = arith.constant 0 : i32
    %c0_i32_0 = arith.constant 0 : i32
    %c0_i32_1 = arith.constant 0 : i32
    return %c0_i32, %c0_i32_0 : i32, i32
  }
  func.func @transform_3(%arg0: i32) -> (i32, i32) {
    %c0_i32 = arith.constant 0 : i32
    %c0_i32_0 = arith.constant 0 : i32
    %c0_i32_1 = arith.constant 0 : i32
    return %c0_i32, %c0_i32_0 : i32, i32
  }
  func.func @transform_4(%arg0: i32) -> (i32, i32) {
    %c0_i32 = arith.constant 0 : i32
    %c0_i32_0 = arith.constant 0 : i32
    %c0_i32_1 = arith.constant 0 : i32
    return %c0_i32, %c0_i32_0 : i32, i32
  }
  func.func @transform_5(%arg0: i32) -> (i32, i32) {
    %c0_i32 = arith.constant 0 : i32
    %c0_i32_0 = arith.constant 0 : i32
    return %arg0, %c0_i32 : i32, i32
  }
}

</mosaic_0001>

<llo_original>
// kernel: nn_forward.1
$region0: #{nn_forward.1}
  #allocation0 [shape = 'u32[]', space=smem, size = 0x4, offset = 0x4, fixed_abs, tag = 'smem constant byte address 0x4 - core index']
  #allocation1 [shape = 'u32[144,128]{1,0:T(1,128)}', space=vmem, size = 0x12000, scoped, tag = 'internal scratch']
  %s0 = inlined_call_operand.vmem [shape: f32[8,32], index: 0, kind: input, shape index: {}]
  %s1 = inlined_call_operand.vmem [shape: bf16[32,64], index: 1, kind: input, shape index: {}]
  %s2 = inlined_call_operand.vmem [shape: f32[1,64], index: 2, kind: input, shape index: {}]
  %s3 = inlined_call_operand.vmem [shape: bf16[64,10], index: 3, kind: input, shape index: {}]
  %s4 = inlined_call_operand.vmem [shape: f32[1,10], index: 4, kind: input, shape index: {}]
  %s5 = inlined_call_operand.hbm [shape: f32[8,10], index: 5, kind: output, shape index: {}]
  %s6 = sld [smem:[#allocation0]]
  $region30: #{nn_forward.1} parent=0
    _
  %s8 = ssub.s32 1, %s6
  %s9 = scalar_select 0, %s8, %s6
  $region1: #{nn_forward.1} parent=0
    #allocation2 [shape = 'u8[4096]{0}', space=vmem, size = 0x1000, scoped, tag = 'output window, operand 0, single buffered']
    #allocation3 [shape = 's32[1]{0}', space=sflag, size = 0x4, scoped, tag = 'scoped memory for nn_forward.1']
    %10 = vsyncpa [#allocation3], 0
    // Predicated region
    $region2: #{nn_forward.1} parent=1 // pred_check
      _
    $region3: #{nn_forward.1} parent=1 // pred_check_branch
      %12 = sbr.rel (0) target = $region5
    $region4: #{nn_forward.1} parent=1 // pred_region
      _
    $region5: #{nn_forward.1} parent=1 // pred_fallthru
      _
    // Predicated region
    $region6: #{nn_forward.1} parent=1 // pred_check
      _
    $region7: #{nn_forward.1} parent=1 // pred_check_branch
      %14 = sbr.rel (0) target = $region9
    $region8: #{nn_forward.1} parent=1 // pred_region
      _
    $region9: #{nn_forward.1} parent=1 // pred_fallthru
      _
    // Predicated region
    $region10: #{nn_forward.1} parent=1 // pred_check
      _
    $region11: #{nn_forward.1} parent=1 // pred_check_branch
      %16 = sbr.rel (0) target = $region13
    $region12: #{nn_forward.1} parent=1 // pred_region
      _
    $region13: #{nn_forward.1} parent=1 // pred_fallthru
      _
    // Predicated region
    $region14: #{nn_forward.1} parent=1 // pred_check
      _
    $region15: #{nn_forward.1} parent=1 // pred_check_branch
      %18 = sbr.rel (0) target = $region17
    $region16: #{nn_forward.1} parent=1 // pred_region
      _
    $region17: #{nn_forward.1} parent=1 // pred_fallthru
      _
    // Predicated region
    $region18: #{nn_forward.1} parent=1 // pred_check
      _
    $region19: #{nn_forward.1} parent=1 // pred_check_branch
      %20 = sbr.rel (0) target = $region21
    $region20: #{nn_forward.1} parent=1 // pred_region
      _
    $region21: #{nn_forward.1} parent=1 // pred_fallthru
      _
    %v22 = vld [vmem:[%s0] sm:$0xff]
    %v23 = vpack.c.bf16 %v22, %v22
    %v24 = vld [vmem:[%s1] sm:$0xf]
    %v25 = vld [vmem:[%s1 + $0x4] sm:$0xf]
    %v26 = vld [vmem:[%s1 + $0x8] sm:$0xf]
    %v27 = vld [vmem:[%s1 + $0xc] sm:$0xf]
    %v28 = vld [vmem:[%s2] sm:$0x1]
    %v30 = vlaneseq
    %v31 = vshrl.u32 %v30, 7
    %v32 = vsub.s32 0, %v31
    %v33 = vrot.slane %v28, %v32
    %v39 = vunpack.c.l.b16 %v24
    %v40 = vunpack.c.l.b16 %v25
    %v41 = vunpack.c.l.b16 %v26
    %v42 = vunpack.c.l.b16 %v27
    %v43 = vpack.c.b16 %v40, %v39
    %v44 = vpack.c.b16 %v42, %v41
    %vm47 = vcmask 261120
    %v49 = vsel %vm47, %v23, 0
    %51 = vmatprep.subr.bf16.mxu0 0
    %52 = vmatpush1.bf16.msra.mxu0 0
    %53 = vmatprep.subr.bf16.mxu0 0
    %54 = vmatpush1.bf16.msra.mxu0 0
    %55 = vmatprep.subr.bf16.mxu0 0
    %56 = vmatpush1.bf16.msra.mxu0 0
    %57 = vmatprep.subr.bf16.mxu0 0
    %58 = vmatpush1.bf16.msra.mxu0 0
    %59 = vmatprep.subr.bf16.mxu0 0
    %60 = vmatpush1.bf16.msra.mxu0 0
    %61 = vmatprep.subr.bf16.mxu0 0
    %62 = vmatpush1.bf16.msra.mxu0 0
    %63 = vmatprep.subr.bf16.mxu0 0
    %64 = vmatpush1.bf16.msra.mxu0 %v44
    %65 = vmatprep.subr.bf16.mxu0 0
    %66 = vmatpush1.bf16.msra.mxu0 %v43
    %67 = vmatprep.subr.bf16.mxu0 0
    %68 = vmatpush2.bf16.msra.mxu0 0
    %69 = vmatprep.subr.bf16.mxu0 0
    %70 = vmatpush2.bf16.msra.mxu0 0
    %71 = vmatprep.subr.bf16.mxu0 0
    %72 = vmatpush2.bf16.msra.mxu0 0
    %73 = vmatprep.subr.bf16.mxu0 0
    %74 = vmatpush2.bf16.msra.mxu0 0
    %75 = vmatprep.subr.bf16.mxu0 0
    %76 = vmatpush2.bf16.msra.mxu0 0
    %77 = vmatprep.subr.bf16.mxu0 0
    %78 = vmatpush2.bf16.msra.mxu0 0
    %79 = vmatprep.subr.bf16.mxu0 0
    %80 = vmatpush2.bf16.msra.mxu0 0
    %81 = vmatprep.subr.bf16.mxu0 0
    %82 = vmatpush2.bf16.msra.mxu0 0
    %83 = vmatprep.mubr.bf16.mxu0 0
    %84 = vmatmul.mubr.bf16.gmra.mxu0 %v49
    %v85 = vpop.f32.mrf.mxu0
    %v86 = vadd.f32 %v33, %v85
    %v87 = vpop.f32.mrf.mxu0
    %v88 = vpop.f32.mrf.mxu0
    %v89 = vpop.f32.mrf.mxu0
    %90 = vdwg.mxu0
    %v91 = vmax.f32 %v86, 0.0
    %v92 = vpack.c.bf16 %v91, %v91
    %v93 = vld [vmem:[%s3] sm:$0xf]
    %v94 = vld [vmem:[%s3 + $0x4] sm:$0xf]
    %v95 = vld [vmem:[%s3 + $0x8] sm:$0xf]
    %v96 = vld [vmem:[%s3 + $0xc] sm:$0xf]
    %v97 = vld [vmem:[%s3 + $0x10] sm:$0xf]
    %v98 = vld [vmem:[%s3 + $0x14] sm:$0xf]
    %v99 = vld [vmem:[%s3 + $0x18] sm:$0xf]
    %v100 = vld [vmem:[%s3 + $0x1c] sm:$0xf]
    %v101 = vld [vmem:[%s4] sm:$0x1]
    %v103 = vlaneseq
    %v104 = vshrl.u32 %v103, 7
    %v105 = vsub.s32 0, %v104
    %v106 = vrot.slane %v101, %v105
    %v116 = vunpack.c.l.b16 %v93
    %v117 = vunpack.c.l.b16 %v94
    %v118 = vunpack.c.l.b16 %v95
    %v119 = vunpack.c.l.b16 %v96
    %v120 = vunpack.c.l.b16 %v97
    %v121 = vunpack.c.l.b16 %v98
    %v122 = vunpack.c.l.b16 %v99
    %v123 = vunpack.c.l.b16 %v100
    %v124 = vpack.c.b16 %v117, %v116
    %v125 = vpack.c.b16 %v119, %v118
    %v126 = vpack.c.b16 %v121, %v120
    %v127 = vpack.c.b16 %v123, %v122
    %vm132 = vcmask 523264
    %v134 = vsel %vm132, %v92, 0
    %136 = vmatprep.subr.bf16.mxu0 0
    %137 = vmatpush1.bf16.msra.mxu0 0
    %138 = vmatprep.subr.bf16.mxu0 0
    %139 = vmatpush1.bf16.msra.mxu0 0
    %140 = vmatprep.subr.bf16.mxu0 0
    %141 = vmatpush1.bf16.msra.mxu0 0
    %142 = vmatprep.subr.bf16.mxu0 0
    %143 = vmatpush1.bf16.msra.mxu0 0
    %144 = vmatprep.subr.bf16.mxu0 0
    %145 = vmatpush1.bf16.msra.mxu0 %v127
    %146 = vmatprep.subr.bf16.mxu0 0
    %147 = vmatpush1.bf16.msra.mxu0 %v126
    %148 = vmatprep.subr.bf16.mxu0 0
    %149 = vmatpush1.bf16.msra.mxu0 %v125
    %150 = vmatprep.subr.bf16.mxu0 0
    %151 = vmatpush1.bf16.msra.mxu0 %v124
    %152 = vmatprep.subr.bf16.mxu0 0
    %153 = vmatpush2.bf16.msra.mxu0 0
    %154 = vmatprep.subr.bf16.mxu0 0
    %155 = vmatpush2.bf16.msra.mxu0 0
    %156 = vmatprep.subr.bf16.mxu0 0
    %157 = vmatpush2.bf16.msra.mxu0 0
    %158 = vmatprep.subr.bf16.mxu0 0
    %159 = vmatpush2.bf16.msra.mxu0 0
    %160 = vmatprep.subr.bf16.mxu0 0
    %161 = vmatpush2.bf16.msra.mxu0 0
    %162 = vmatprep.subr.bf16.mxu0 0
    %163 = vmatpush2.bf16.msra.mxu0 0
    %164 = vmatprep.subr.bf16.mxu0 0
    %165 = vmatpush2.bf16.msra.mxu0 0
    %166 = vmatprep.subr.bf16.mxu0 0
    %167 = vmatpush2.bf16.msra.mxu0 0
    %168 = vmatprep.mubr.bf16.mxu0 0
    %169 = vmatmul.mubr.bf16.gmra.mxu0 %v134
    %v170 = vpop.f32.mrf.mxu0
    %v171 = vadd.f32 %v106, %v170
    %v172 = vpop.f32.mrf.mxu0
    %v173 = vpop.f32.mrf.mxu0
    %v174 = vpop.f32.mrf.mxu0
    %175 = vdwg.mxu0
    %vm176 = vcmask 80896
    %177 = vst.msk [vmem:[#allocation2] sm:$0xff] %vm176, %v171
    // Predicated region
    $region22: #{nn_forward.1} parent=1 // pred_check
      _
    $region23: #{nn_forward.1} parent=1 // pred_check_branch
      %179 = sbr.rel (0) target = $region25
    $region24: #{nn_forward.1} parent=1 // pred_region
      %s181 = ssub.s32 128, 128
      %182 = vsyncadd [#allocation3], %s181
      %s184 = sshll.u32 [#allocation2], 4
      %s185 = int_to_ptr.vmem [resolvable:$true] %s184
      %187 = dma.vmem_to_hbm [thread:$0]  %s185, 128, %s5, [#allocation3]
    $region25: #{nn_forward.1} parent=1 // pred_fallthru
      _
    // Predicated region
    $region26: #{nn_forward.1} parent=1 // pred_check
      _
    $region27: #{nn_forward.1} parent=1 // pred_check_branch
      %189 = sbr.rel (0) target = $region29
    $region28: #{nn_forward.1} parent=1 // pred_region
      %190 = dma.done [#allocation3], 128
    $region29: #{nn_forward.1} parent=1 // pred_fallthru
      _
    %191 = vsyncpa [#allocation3], 1

</llo_original>
